<compile_context>
chip_gen: v5e
topology: v5e:2x2
jax: 0.10.0
libtpu: 0.0.40
codegen_flags: <defaults>
</compile_context>

<pallas_src>
import functools

import jax
import jax.numpy as jnp
from jax.experimental import pallas as pl
from jax.experimental.pallas import tpu as pltpu

LN_EPS = 1e-5


def _round_up(x, m):
    return ((x + m - 1) // m) * m


# Feature probe: pipeline_mode=pl.Buffered(1) for grid-invariant operands
# (single-buffer the resident weights / vectors).  Falls back to default
# double-buffering on older jax versions.
try:
    pl.BlockSpec((8, 128), lambda i: (0, 0), pipeline_mode=pl.Buffered(1))
    _HAS_BUFFERED = True
except Exception:  # pragma: no cover - older jax
    _HAS_BUFFERED = False


def _const_spec(block_shape):
    """BlockSpec for a grid-invariant (resident) operand."""
    index_map = lambda i: (0,) * len(block_shape)
    if _HAS_BUFFERED:
        return pl.BlockSpec(block_shape, index_map,
                            pipeline_mode=pl.Buffered(1))
    return pl.BlockSpec(block_shape, index_map)


def _transition_kernel(s_ref, w1_ref, w2_ref, w3_ref, vec_ref, o_ref, *, c_s):
    """One (tm, c_pad) row tile of the flattened single representation."""
    c_pad = s_ref.shape[-1]
    mm_dtype = w1_ref.dtype          # bf16 (full-rate MXU) or f32

    s_f32 = s_ref[...].astype(jnp.float32)

    # Packed per-channel vectors: rows 0..4 = b1, b2, b3, gamma, beta.
    vecs = vec_ref[...]
    b1, b2, b3 = vecs[0:1, :], vecs[1:2, :], vecs[2:3, :]
    gamma, beta = vecs[3:4, :], vecs[4:5, :]

    def dense(x_f32, w_ref, b):
        # MXU matmul: narrow operands, f32 accumulation; bias add in f32.
        y = jnp.dot(x_f32.astype(mm_dtype), w_ref[...],
                    preferred_element_type=jnp.float32)
        return y + b

    h = jnp.maximum(dense(s_f32, w1_ref, b1), 0.0)   # linear_1 -> relu
    h = jnp.maximum(dense(h, w2_ref, b2), 0.0)       # linear_2 -> relu
    h = dense(h, w3_ref, b3)                         # linear_3
    r = s_f32 + h                                    # residual (f32)

    # dropout(p=0.1) is the identity in eval mode.
    # TODO(synk): training-mode dropout (RNG mask + 1/(1-p) scaling) not implemented.

    # LayerNorm over the true c_s channels.  Padded lanes are exactly zero
    # (weights/biases/gamma/beta were zero-padded) and are masked out of the
    # variance so padding does not change the math.
    inv_c = 1.0 / c_s
    mean = jnp.sum(r, axis=-1, keepdims=True) * inv_c
    centered = r - mean
    if c_pad != c_s:
        lane = jax.lax.broadcasted_iota(jnp.int32, (1, c_pad), 1)
        centered = jnp.where(lane < c_s, centered, 0.0)
    var = jnp.sum(centered * centered, axis=-1, keepdims=True) * inv_c
    normed = centered * jax.lax.rsqrt(var + LN_EPS)
    o_ref[...] = (normed * gamma + beta).astype(o_ref.dtype)


def _vmem_limit_bytes(tm_eff, c_pad, act_itemsize, mm_itemsize):
    """Tile-footprint-derived VMEM request (with headroom), capped for v7x."""
    io_tiles = 2 * (2 * tm_eff * c_pad * act_itemsize)   # in + out, double-buffered
    weights = 3 * c_pad * c_pad * mm_itemsize            # resident weight matrices
    vec_pack = 8 * c_pad * 4
    interm = 4 * tm_eff * c_pad * 4                      # f32 intermediates (s, h, r, out)
    est = io_tiles + weights + vec_pack + interm
    est = est * 3 // 2                                    # 50% headroom / compiler scratch
    return int(min(max(est, 16 * 1024 * 1024), 48 * 1024 * 1024))


@functools.partial(jax.jit, static_argnames=("tm", "use_bf16_matmul", "training"))
def structure_module_transition(s, params, tm=2048, use_bf16_matmul=True,
                                training=False):
    """s: (..., N_res, c_s) -> (..., N_res, c_s).  s may be f32 or bf16."""
    if training:
        raise NotImplementedError(
            "training-mode dropout not implemented; eval forward only")

    w1, b1, w2, b2, w3, b3, gamma, beta = params
    orig_shape = s.shape
    c_s = orig_shape[-1]
    s2d = s.reshape(-1, c_s)
    m = s2d.shape[0]

    # Lane-dense channel padding only when c_s is not already lane-aligned.
    c_pad = _round_up(c_s, 128)
    pad_c = c_pad - c_s

    # Row tile: big enough to amortize the ~0.35us per-grid-step overhead,
    # clamped to the problem and capped so the grid has >= 2 steps (so the
    # "parallel" axis can span both v7x TensorCores).
    tm_eff = max(8, min(tm, _round_up(pl.cdiv(m, 2), 8)))
    grid = pl.cdiv(m, tm_eff)     # ragged last block handled by Pallas

    mm_dtype = jnp.bfloat16 if use_bf16_matmul else jnp.float32

    s_p = s2d if pad_c == 0 else jnp.pad(s2d, ((0, 0), (0, pad_c)))

    def pad_w(w):
        wp = w if pad_c == 0 else jnp.pad(w, ((0, pad_c), (0, pad_c)))
        return wp.astype(mm_dtype)

    def pad_v(v):
        vp = v if pad_c == 0 else jnp.pad(v, ((0, pad_c),))
        return vp.astype(jnp.float32)

    w1p, w2p, w3p = pad_w(w1), pad_w(w2), pad_w(w3)
    # Pack the five per-channel vectors into one (8, c_pad) f32 array
    # (rows 5..7 are zero filler) -> a single grid-invariant DMA.
    vec_pack = jnp.concatenate(
        [jnp.stack([pad_v(b1), pad_v(b2), pad_v(b3), pad_v(gamma), pad_v(beta)]),
         jnp.zeros((3, c_pad), jnp.float32)], axis=0)

    row_spec = pl.BlockSpec((tm_eff, c_pad), lambda i: (i, 0))
    w_spec = _const_spec((c_pad, c_pad))
    vec_spec = _const_spec((8, c_pad))

    mm_itemsize = 2 if use_bf16_matmul else 4
    act_itemsize = jnp.dtype(s.dtype).itemsize

    # Advisory cost estimate for XLA's scheduler.
    cost = pl.CostEstimate(
        flops=6 * m * c_pad * c_pad,
        transcendentals=m,
        bytes_accessed=(2 * m * c_pad * act_itemsize
                        + 3 * c_pad * c_pad * mm_itemsize
                        + 8 * c_pad * 4),
    )

    kernel = functools.partial(_transition_kernel, c_s=c_s)

    out_p = pl.pallas_call(
        kernel,
        out_shape=jax.ShapeDtypeStruct((m, c_pad), s.dtype),
        grid_spec=pltpu.PrefetchScalarGridSpec(
            num_scalar_prefetch=0,
            grid=(grid,),
            in_specs=[row_spec, w_spec, w_spec, w_spec, vec_spec],
            out_specs=row_spec,
        ),
        compiler_params=pltpu.CompilerParams(
            dimension_semantics=("parallel",),
            vmem_limit_bytes=_vmem_limit_bytes(tm_eff, c_pad,
                                               act_itemsize, mm_itemsize)),
        cost_estimate=cost,
    )(s_p, w1p, w2p, w3p, vec_pack)

    out = out_p if pad_c == 0 else out_p[:, :c_s]
    return out.reshape(orig_shape)


def init_params(key, c_s, dtype=jnp.float32):
    """Deterministic init matching nn.Linear default U(-1/sqrt(in), 1/sqrt(in)).

    Weights are stored as (c_s_in, c_s_out) (already transposed relative to
    PyTorch's (out, in) convention).
    """
    keys = jax.random.split(key, 6)
    bound = 1.0 / jnp.sqrt(c_s)

    def lin(kw, kb):
        w = jax.random.uniform(kw, (c_s, c_s), dtype, -bound, bound)
        b = jax.random.uniform(kb, (c_s,), dtype, -bound, bound)
        return w, b

    w1, b1 = lin(keys[0], keys[1])
    w2, b2 = lin(keys[2], keys[3])
    w3, b3 = lin(keys[4], keys[5])
    gamma = jnp.ones((c_s,), dtype)     # LayerNorm weight
    beta = jnp.zeros((c_s,), dtype)     # LayerNorm bias
    return (w1, b1, w2, b2, w3, b3, gamma, beta)


def _reference(s, params, use_bf16_matmul):
    """Pure-JAX reference; optionally matches the kernel's matmul precision."""
    w1, b1, w2, b2, w3, b3, gamma, beta = params
    mm = jnp.bfloat16 if use_bf16_matmul else jnp.float32

    def dense(x, w, b):
        return jnp.dot(x.astype(mm), w.astype(mm),
                       preferred_element_type=jnp.float32) + b

    s_f32 = s.astype(jnp.float32)
    h = jnp.maximum(dense(s_f32, w1, b1), 0.0)
    h = jnp.maximum(dense(h, w2, b2), 0.0)
    h = dense(h, w3, b3)
    r = s_f32 + h
    mean = jnp.mean(r, axis=-1, keepdims=True)
    var = jnp.mean((r - mean) ** 2, axis=-1, keepdims=True)
    out = (r - mean) * jax.lax.rsqrt(var + LN_EPS) * gamma + beta
    return out.astype(s.dtype)


if __name__ == "__main__":
    key = jax.random.PRNGKey(0)
    k_s, k_p, k_s2 = jax.random.split(key, 3)

    batch, n_res, c_s = 2, 8, 32
    params = init_params(k_p, c_s)

    # Case 1: evenly-divisible rows (m = 16, tile = 8, grid = 2).
    s = jax.random.normal(k_s, (batch, n_res, c_s), jnp.float32)
    out = jax.block_until_ready(structure_module_transition(s, params))
    assert out.shape == s.shape
    ref_mm = _reference(s, params, use_bf16_matmul=True)
    assert jnp.allclose(out, ref_mm, atol=1e-3, rtol=1e-3), \
        "mismatch vs precision-matched reference"
    ref_f32 = _reference(s, params, use_bf16_matmul=False)
    assert jnp.allclose(out, ref_f32, atol=3e-2, rtol=3e-2), \
        "mismatch vs f32 reference"

    # Case 2: ragged rows (m = 14 not a multiple of the 8-row tile) to exercise
    # the no-row-padding path with a masked last block.
    s_rag = jax.random.normal(k_s2, (batch, 7, c_s), jnp.float32)
    out_rag = jax.block_until_ready(structure_module_transition(s_rag, params))
    assert out_rag.shape == s_rag.shape
    assert jnp.allclose(out_rag, _reference(s_rag, params, True),
                        atol=1e-3, rtol=1e-3), "ragged-row mismatch"

    # Case 3: bf16 activation I/O smoke test (bandwidth-saving path).
    s_bf16 = s.astype(jnp.bfloat16)
    out_bf16 = jax.block_until_ready(structure_module_transition(s_bf16, params))
    assert out_bf16.shape == s_bf16.shape
    assert bool(jnp.all(jnp.isfinite(out_bf16.astype(jnp.float32))))

    print("KERNEL_OK")
</pallas_src>

<mosaic_0001>
module attributes {stable_mosaic.version = 11 : i64} {
  func.func @_transition_kernel(%arg0: i32, %arg1: memref<8x128xf32, #tpu.memory_space<vmem>>, %arg2: memref<128x128xbf16, #tpu.memory_space<vmem>>, %arg3: memref<128x128xbf16, #tpu.memory_space<vmem>>, %arg4: memref<128x128xbf16, #tpu.memory_space<vmem>>, %arg5: memref<8x128xf32, #tpu.memory_space<vmem>>, %arg6: memref<8x128xf32, #tpu.memory_space<vmem>>) attributes {dimension_semantics = [#tpu.dimension_semantics<parallel>], iteration_bounds = array<i64: 2>, scalar_prefetch = 0 : i64, scratch_operands = 0 : i64, tpu.core_type = #tpu.core_type<tc>, window_params = [{transform_indices = @transform_0, window_bounds = array<i64: 8, 128>}, {pipeline_mode = #tpu.pipeline_mode<synchronous>, transform_indices = @transform_1, window_bounds = array<i64: 128, 128>}, {pipeline_mode = #tpu.pipeline_mode<synchronous>, transform_indices = @transform_2, window_bounds = array<i64: 128, 128>}, {pipeline_mode = #tpu.pipeline_mode<synchronous>, transform_indices = @transform_3, window_bounds = array<i64: 128, 128>}, {pipeline_mode = #tpu.pipeline_mode<synchronous>, transform_indices = @transform_4, window_bounds = array<i64: 8, 128>}, {transform_indices = @transform_5, window_bounds = array<i64: 8, 128>}]} {
    %c0 = arith.constant 0 : index
    %c0_0 = arith.constant 0 : index
    %0 = vector.load %arg1[%c0, %c0_0] : memref<8x128xf32, #tpu.memory_space<vmem>>, vector<8x128xf32>
    %c0_1 = arith.constant 0 : index
    %c0_2 = arith.constant 0 : index
    %1 = vector.load %arg5[%c0_1, %c0_2] : memref<8x128xf32, #tpu.memory_space<vmem>>, vector<8x128xf32>
    %2 = vector.extract_strided_slice %1 {offsets = [0, 0], sizes = [1, 128], strides = [1, 1]} : vector<8x128xf32> to vector<1x128xf32>
    %3 = vector.extract_strided_slice %1 {offsets = [1, 0], sizes = [1, 128], strides = [1, 1]} : vector<8x128xf32> to vector<1x128xf32>
    %4 = vector.extract_strided_slice %1 {offsets = [2, 0], sizes = [1, 128], strides = [1, 1]} : vector<8x128xf32> to vector<1x128xf32>
    %5 = vector.extract_strided_slice %1 {offsets = [3, 0], sizes = [1, 128], strides = [1, 1]} : vector<8x128xf32> to vector<1x128xf32>
    %6 = vector.extract_strided_slice %1 {offsets = [4, 0], sizes = [1, 128], strides = [1, 1]} : vector<8x128xf32> to vector<1x128xf32>
    %7 = arith.truncf %0 : vector<8x128xf32> to vector<8x128xbf16>
    %c0_3 = arith.constant 0 : index
    %c0_4 = arith.constant 0 : index
    %8 = vector.load %arg2[%c0_3, %c0_4] : memref<128x128xbf16, #tpu.memory_space<vmem>>, vector<128x128xbf16>
    %cst = arith.constant dense<0.000000e+00> : vector<8x128xf32>
    %9 = tpu.matmul %7, %8, %cst {dimension_numbers = #tpu.dot_dimension_numbers<[1], [0], [0], [1], [0, 0, 1, 1], [], []>} : vector<8x128xbf16>, vector<128x128xbf16>, vector<8x128xf32> -> vector<8x128xf32>
    %10 = vector.broadcast %2 : vector<1x128xf32> to vector<8x128xf32>
    %11 = arith.addf %9, %10 : vector<8x128xf32>
    %cst_5 = arith.constant 0.000000e+00 : f32
    %12 = vector.broadcast %cst_5 : f32 to vector<8x128xf32>
    %13 = arith.maximumf %11, %12 : vector<8x128xf32>
    %14 = arith.truncf %13 : vector<8x128xf32> to vector<8x128xbf16>
    %c0_6 = arith.constant 0 : index
    %c0_7 = arith.constant 0 : index
    %15 = vector.load %arg3[%c0_6, %c0_7] : memref<128x128xbf16, #tpu.memory_space<vmem>>, vector<128x128xbf16>
    %cst_8 = arith.constant dense<0.000000e+00> : vector<8x128xf32>
    %16 = tpu.matmul %14, %15, %cst_8 {dimension_numbers = #tpu.dot_dimension_numbers<[1], [0], [0], [1], [0, 0, 1, 1], [], []>} : vector<8x128xbf16>, vector<128x128xbf16>, vector<8x128xf32> -> vector<8x128xf32>
    %17 = vector.broadcast %3 : vector<1x128xf32> to vector<8x128xf32>
    %18 = arith.addf %16, %17 : vector<8x128xf32>
    %cst_9 = arith.constant 0.000000e+00 : f32
    %19 = vector.broadcast %cst_9 : f32 to vector<8x128xf32>
    %20 = arith.maximumf %18, %19 : vector<8x128xf32>
    %21 = arith.truncf %20 : vector<8x128xf32> to vector<8x128xbf16>
    %c0_10 = arith.constant 0 : index
    %c0_11 = arith.constant 0 : index
    %22 = vector.load %arg4[%c0_10, %c0_11] : memref<128x128xbf16, #tpu.memory_space<vmem>>, vector<128x128xbf16>
    %cst_12 = arith.constant dense<0.000000e+00> : vector<8x128xf32>
    %23 = tpu.matmul %21, %22, %cst_12 {dimension_numbers = #tpu.dot_dimension_numbers<[1], [0], [0], [1], [0, 0, 1, 1], [], []>} : vector<8x128xbf16>, vector<128x128xbf16>, vector<8x128xf32> -> vector<8x128xf32>
    %24 = vector.broadcast %4 : vector<1x128xf32> to vector<8x128xf32>
    %25 = arith.addf %23, %24 : vector<8x128xf32>
    %26 = arith.addf %0, %25 : vector<8x128xf32>
    %cst_13 = arith.constant dense<0.000000e+00> : vector<8xf32>
    %27 = vector.multi_reduction <add>, %26, %cst_13 [1] : vector<8x128xf32> to vector<8xf32>
    %28 = vector.shape_cast %27 : vector<8xf32> to vector<8x1xf32>
    %cst_14 = arith.constant 3.125000e-02 : f32
    %29 = vector.broadcast %cst_14 : f32 to vector<8x1xf32>
    %30 = arith.mulf %28, %29 : vector<8x1xf32>
    %31 = vector.broadcast %30 : vector<8x1xf32> to vector<8x128xf32>
    %32 = arith.subf %26, %31 : vector<8x128xf32>
    %33 = tpu.iota {dimensions = array<i32: 1>} : vector<1x128xi32>
    %c32_i32 = arith.constant 32 : i32
    %34 = vector.broadcast %c32_i32 : i32 to vector<1x128xi32>
    %35 = arith.cmpi slt, %33, %34 : vector<1x128xi32>
    %cst_15 = arith.constant 0.000000e+00 : f32
    %36 = vector.shape_cast %35 : vector<1x128xi1> to vector<1x128xi1>
    %37 = vector.broadcast %36 : vector<1x128xi1> to vector<8x128xi1>
    %38 = vector.broadcast %cst_15 : f32 to vector<8x128xf32>
    %39 = arith.select %37, %32, %38 : vector<8x128xi1>, vector<8x128xf32>
    %40 = arith.mulf %39, %39 : vector<8x128xf32>
    %cst_16 = arith.constant dense<0.000000e+00> : vector<8xf32>
    %41 = vector.multi_reduction <add>, %40, %cst_16 [1] : vector<8x128xf32> to vector<8xf32>
    %42 = vector.shape_cast %41 : vector<8xf32> to vector<8x1xf32>
    %cst_17 = arith.constant 3.125000e-02 : f32
    %43 = vector.broadcast %cst_17 : f32 to vector<8x1xf32>
    %44 = arith.mulf %42, %43 : vector<8x1xf32>
    %cst_18 = arith.constant 9.99999974E-6 : f32
    %45 = vector.broadcast %cst_18 : f32 to vector<8x1xf32>
    %46 = arith.addf %44, %45 : vector<8x1xf32>
    %47 = math.rsqrt %46 : vector<8x1xf32>
    %48 = vector.broadcast %47 : vector<8x1xf32> to vector<8x128xf32>
    %49 = arith.mulf %39, %48 : vector<8x128xf32>
    %50 = vector.broadcast %5 : vector<1x128xf32> to vector<8x128xf32>
    %51 = arith.mulf %49, %50 : vector<8x128xf32>
    %52 = vector.broadcast %6 : vector<1x128xf32> to vector<8x128xf32>
    %53 = arith.addf %51, %52 : vector<8x128xf32>
    %c0_19 = arith.constant 0 : index
    %c0_20 = arith.constant 0 : index
    %54 = vector.load %arg6[%c0_19, %c0_20] : memref<8x128xf32, #tpu.memory_space<vmem>>, vector<8x128xf32>
    tpu.vector_store %arg6[%c0_19, %c0_20], %53 {strides = array<i32>} : memref<8x128xf32, #tpu.memory_space<vmem>>, vector<8x128xf32>,
    return
  }
  func.func @transform_0(%arg0: i32) -> (i32, i32) {
    %c0_i32 = arith.constant 0 : i32
    %c0_i32_0 = arith.constant 0 : i32
    return %arg0, %c0_i32 : i32, i32
  }
  func.func @transform_1(%arg0: i32) -> (i32, i32) {
    %c0_i32 = arith.constant 0 : i32
    %c0_i32_0 = arith.constant 0 : i32
    %c0_i32_1 = arith.constant 0 : i32
    return %c0_i32, %c0_i32_0 : i32, i32
  }
  func.func @transform_2(%arg0: i32) -> (i32, i32) {
    %c0_i32 = arith.constant 0 : i32
    %c0_i32_0 = arith.constant 0 : i32
    %c0_i32_1 = arith.constant 0 : i32
    return %c0_i32, %c0_i32_0 : i32, i32
  }
  func.func @transform_3(%arg0: i32) -> (i32, i32) {
    %c0_i32 = arith.constant 0 : i32
    %c0_i32_0 = arith.constant 0 : i32
    %c0_i32_1 = arith.constant 0 : i32
    return %c0_i32, %c0_i32_0 : i32, i32
  }
  func.func @transform_4(%arg0: i32) -> (i32, i32) {
    %c0_i32 = arith.constant 0 : i32
    %c0_i32_0 = arith.constant 0 : i32
    %c0_i32_1 = arith.constant 0 : i32
    return %c0_i32, %c0_i32_0 : i32, i32
  }
  func.func @transform_5(%arg0: i32) -> (i32, i32) {
    %c0_i32 = arith.constant 0 : i32
    %c0_i32_0 = arith.constant 0 : i32
    return %arg0, %c0_i32 : i32, i32
  }
}

</mosaic_0001>

<llo_original>
// kernel: structure_module_transition.1
$region0: #{structure_module_transition.1}
  #allocation0 [shape = 'u32[]', space=smem, size = 0x4, offset = 0x4, fixed_abs, tag = 'smem constant byte address 0x4 - core index']
  #allocation1 [shape = 'u32[72,128]{1,0:T(1,128)}', space=vmem, size = 0x9000, scoped, tag = 'internal scratch']
  %s0 = inlined_call_operand.vmem [shape: f32[16,128], index: 0, kind: input, shape index: {}]
  %s1 = inlined_call_operand.vmem [shape: bf16[128,128], index: 1, kind: input, shape index: {}]
  %s2 = inlined_call_operand.vmem [shape: bf16[128,128], index: 2, kind: input, shape index: {}]
  %s3 = inlined_call_operand.vmem [shape: bf16[128,128], index: 3, kind: input, shape index: {}]
  %s4 = inlined_call_operand.vmem [shape: f32[8,128], index: 4, kind: input, shape index: {}]
  %s5 = inlined_call_operand.vmem [shape: f32[16,128], index: 5, kind: output, shape index: {}]
  %s6 = sld [smem:[#allocation0]]
  $region53: #{structure_module_transition.1} parent=0
    _
  %s8 = ssub.s32 1, %s6
  %s9 = scalar_select 0, %s8, %s6
  loop: start=0, step=1, limit=4
  $region2: #{structure_module_transition.1} parent=0 // loop_pre_header
    _
  $region3: #{structure_module_transition.1} parent=0 // loop_header
    %s11 = sphi 0, %s15
    %p12 = scmp.ge.s32.totalorder %s11, 4
    %s21 = sphi 0, %s23
    %s24 = sphi 0, %s21
    %s25 = sphi 0, %s24
    %s41 = sphi 0, %s25
    %s45 = sphi 0, %s45
    %s47 = sphi 0, %s45
    %s48 = sphi 0, %s47
    %s62 = sphi 0, %s48
    %s66 = sphi 0, %s66
    %s68 = sphi 0, %s66
    %s69 = sphi 0, %s68
    %s83 = sphi 0, %s69
    %s87 = sphi 0, %s87
    %s89 = sphi 0, %s87
    %s90 = sphi 0, %s89
    %s104 = sphi 0, %s90
    %s108 = sphi 0, %s108
    %s110 = sphi 0, %s108
    %s111 = sphi 0, %s110
    %s125 = sphi 0, %s111
    %s131 = sphi 0, %s133
    %s134 = sphi 0, %s131
    %s135 = sphi 0, %s134
    %s151 = sphi 0, %s135
  $region4: #{structure_module_transition.1} parent=0 // loop_header_branch
    %14 = sbr.rel (%p12) target = $region8
  $region5: #{structure_module_transition.1} parent=0 // loop_body
    %s16 = ssub.s32 %s11, 1
    %s17 = ssub.s32 %s11, 2
    %s18 = sadd.s32 %s11, 1
    %s19 = ssub.s32 %s11, %s18
    %p20 = scmp.eq.s32.totalorder %s19, 0
    %s22 = sadd.s32 %s21, 1
    %s23 = scalar_select %p20, %s21, %s22
    %p26 = pneg %p20
    %p27 = scmp.eq.s32.totalorder %s11, 1
    %p28 = por %p26, %p27
    %p29 = scmp.ne.s32.totalorder %s21, %s24
    %p30 = scmp.eq.s32.totalorder %s11, 0
    %p31 = por %p29, %p30
    %p32 = scmp.ne.s32.totalorder %s21, %s24
    %p33 = scmp.eq.s32.totalorder %s16, 1
    %p34 = por %p32, %p33
    %p35 = scmp.ne.s32.totalorder %s24, %s25
    %p36 = scmp.eq.s32.totalorder %s16, 0
    %p37 = por %p35, %p36
    %p38 = scmp.ne.s32.totalorder %s24, %s25
    %p39 = scmp.eq.s32.totalorder %s17, 1
    %p40 = por %p38, %p39
    %p42 = scmp.ne.s32.totalorder %s25, %s41
    %p43 = scmp.eq.s32.totalorder %s17, 0
    %p44 = por %p42, %p43
    %s46 = sadd.s32 %s45, 1
    %p49 = scmp.eq.s32.totalorder %s11, 1
    %p50 = scmp.ne.s32.totalorder %s45, %s47
    %p51 = scmp.eq.s32.totalorder %s11, 0
    %p52 = por %p50, %p51
    %p53 = scmp.ne.s32.totalorder %s45, %s47
    %p54 = scmp.eq.s32.totalorder %s16, 1
    %p55 = por %p53, %p54
    %p56 = scmp.ne.s32.totalorder %s47, %s48
    %p57 = scmp.eq.s32.totalorder %s16, 0
    %p58 = por %p56, %p57
    %p59 = scmp.ne.s32.totalorder %s47, %s48
    %p60 = scmp.eq.s32.totalorder %s17, 1
    %p61 = por %p59, %p60
    %p63 = scmp.ne.s32.totalorder %s48, %s62
    %p64 = scmp.eq.s32.totalorder %s17, 0
    %p65 = por %p63, %p64
    %s67 = sadd.s32 %s66, 1
    %p70 = scmp.eq.s32.totalorder %s11, 1
    %p71 = scmp.ne.s32.totalorder %s66, %s68
    %p72 = scmp.eq.s32.totalorder %s11, 0
    %p73 = por %p71, %p72
    %p74 = scmp.ne.s32.totalorder %s66, %s68
    %p75 = scmp.eq.s32.totalorder %s16, 1
    %p76 = por %p74, %p75
    %p77 = scmp.ne.s32.totalorder %s68, %s69
    %p78 = scmp.eq.s32.totalorder %s16, 0
    %p79 = por %p77, %p78
    %p80 = scmp.ne.s32.totalorder %s68, %s69
    %p81 = scmp.eq.s32.totalorder %s17, 1
    %p82 = por %p80, %p81
    %p84 = scmp.ne.s32.totalorder %s69, %s83
    %p85 = scmp.eq.s32.totalorder %s17, 0
    %p86 = por %p84, %p85
    %s88 = sadd.s32 %s87, 1
    %p91 = scmp.eq.s32.totalorder %s11, 1
    %p92 = scmp.ne.s32.totalorder %s87, %s89
    %p93 = scmp.eq.s32.totalorder %s11, 0
    %p94 = por %p92, %p93
    %p95 = scmp.ne.s32.totalorder %s87, %s89
    %p96 = scmp.eq.s32.totalorder %s16, 1
    %p97 = por %p95, %p96
    %p98 = scmp.ne.s32.totalorder %s89, %s90
    %p99 = scmp.eq.s32.totalorder %s16, 0
    %p100 = por %p98, %p99
    %p101 = scmp.ne.s32.totalorder %s89, %s90
    %p102 = scmp.eq.s32.totalorder %s17, 1
    %p103 = por %p101, %p102
    %p105 = scmp.ne.s32.totalorder %s90, %s104
    %p106 = scmp.eq.s32.totalorder %s17, 0
    %p107 = por %p105, %p106
    %s109 = sadd.s32 %s108, 1
    %p112 = scmp.eq.s32.totalorder %s11, 1
    %p113 = scmp.ne.s32.totalorder %s108, %s110
    %p114 = scmp.eq.s32.totalorder %s11, 0
    %p115 = por %p113, %p114
    %p116 = scmp.ne.s32.totalorder %s108, %s110
    %p117 = scmp.eq.s32.totalorder %s16, 1
    %p118 = por %p116, %p117
    %p119 = scmp.ne.s32.totalorder %s110, %s111
    %p120 = scmp.eq.s32.totalorder %s16, 0
    %p121 = por %p119, %p120
    %p122 = scmp.ne.s32.totalorder %s110, %s111
    %p123 = scmp.eq.s32.totalorder %s17, 1
    %p124 = por %p122, %p123
    %p126 = scmp.ne.s32.totalorder %s111, %s125
    %p127 = scmp.eq.s32.totalorder %s17, 0
    %p128 = por %p126, %p127
    %s129 = ssub.s32 %s11, %s18
    %p130 = scmp.eq.s32.totalorder %s129, 0
    %s132 = sadd.s32 %s131, 1
    %s133 = scalar_select %p130, %s131, %s132
    %p136 = pneg %p130
    %p137 = scmp.eq.s32.totalorder %s11, 1
    %p138 = por %p136, %p137
    %p139 = scmp.ne.s32.totalorder %s131, %s134
    %p140 = scmp.eq.s32.totalorder %s11, 0
    %p141 = por %p139, %p140
    %p142 = scmp.ne.s32.totalorder %s131, %s134
    %p143 = scmp.eq.s32.totalorder %s16, 1
    %p144 = por %p142, %p143
    %p145 = scmp.ne.s32.totalorder %s134, %s135
    %p146 = scmp.eq.s32.totalorder %s16, 0
    %p147 = por %p145, %p146
    %p148 = scmp.ne.s32.totalorder %s134, %s135
    %p149 = scmp.eq.s32.totalorder %s17, 1
    %p150 = por %p148, %p149
    %p152 = scmp.ne.s32.totalorder %s135, %s151
    %p153 = scmp.eq.s32.totalorder %s17, 0
    %p154 = por %p152, %p153
    %p155 = scmp.le.s32.totalorder 1, %s11
    %p156 = scmp.lt.s32.totalorder %s11, 3
    %p157 = pnand %p155, %p156
    %p158 = pneg %p157
    // Predicated region
    $region9: #{structure_module_transition.1} parent=5 // pred_check
      _
    $region10: #{structure_module_transition.1} parent=5 // pred_check_branch
      %160 = sbr.rel (%p157) target = $region12
    $region11: #{structure_module_transition.1} parent=5 // pred_region
      %s161 = ssub.s32 %s11, 1
      // Predicated region
      $region13: #{structure_module_transition.1} parent=11 // pred_check
        %p162 = pneg %p58
      $region14: #{structure_module_transition.1} parent=11 // pred_check_branch
        %164 = sbr.rel (%p162) target = $region16
      $region15: #{structure_module_transition.1} parent=11 // pred_region
        _
      $region16: #{structure_module_transition.1} parent=11 // pred_fallthru
        _
      // Predicated region
      $region17: #{structure_module_transition.1} parent=11 // pred_check
        %p165 = pneg %p79
      $region18: #{structure_module_transition.1} parent=11 // pred_check_branch
        %167 = sbr.rel (%p165) target = $region20
      $region19: #{structure_module_transition.1} parent=11 // pred_region
        _
      $region20: #{structure_module_transition.1} parent=11 // pred_fallthru
        _
      // Predicated region
      $region21: #{structure_module_transition.1} parent=11 // pred_check
        %p168 = pneg %p100
      $region22: #{structure_module_transition.1} parent=11 // pred_check_branch
        %170 = sbr.rel (%p168) target = $region24
      $region23: #{structure_module_transition.1} parent=11 // pred_region
        _
      $region24: #{structure_module_transition.1} parent=11 // pred_fallthru
        _
      // Predicated region
      $region25: #{structure_module_transition.1} parent=11 // pred_check
        %p171 = pneg %p121
      $region26: #{structure_module_transition.1} parent=11 // pred_check_branch
        %173 = sbr.rel (%p171) target = $region28
      $region27: #{structure_module_transition.1} parent=11 // pred_region
        _
      $region28: #{structure_module_transition.1} parent=11 // pred_fallthru
        _
    $region12: #{structure_module_transition.1} parent=5 // pred_fallthru
      _
    %p174 = scmp.lt.s32.totalorder %s11, 2
    // Predicated region
    $region29: #{structure_module_transition.1} parent=5 // pred_check
      %p175 = pneg %p174
    $region30: #{structure_module_transition.1} parent=5 // pred_check_branch
      %177 = sbr.rel (%p175) target = $region32
    $region31: #{structure_module_transition.1} parent=5 // pred_region
      // Predicated region
      $region33: #{structure_module_transition.1} parent=31 // pred_check
        %p178 = pneg %p31
      $region34: #{structure_module_transition.1} parent=31 // pred_check_branch
        %180 = sbr.rel (%p178) target = $region36
      $region35: #{structure_module_transition.1} parent=31 // pred_region
        %p181 = scmp.lt.s32.totalorder %s11, 1
        %s182 = scalar_select %p181, %s11, 1
        %s183 = smul.addr %s182, 8
        %s184 = scalar_lea.vmem %s0, %s183
      $region36: #{structure_module_transition.1} parent=31 // pred_fallthru
        _
    $region32: #{structure_module_transition.1} parent=5 // pred_fallthru
      _
    %p185 = scmp.le.s32.totalorder 1, %s11
    %p186 = scmp.lt.s32.totalorder %s11, 3
    %p187 = pnand %p185, %p186
    %p188 = pneg %p187
    // Predicated region
    $region37: #{structure_module_transition.1} parent=5 // pred_check
      _
    $region38: #{structure_module_transition.1} parent=5 // pred_check_branch
      %190 = sbr.rel (%p187) target = $region40
    $region39: #{structure_module_transition.1} parent=5 // pred_region
      %s191 = ssub.s32 %s11, 1
      %p192 = scmp.lt.s32.totalorder %s16, 1
      %s193 = scalar_select %p192, %s16, 1
      %s194 = smul.addr %s193, 8
      %s195 = scalar_lea.vmem %s0, %s194
      %p196 = pneg %p37
      %p197 = pneg %p34
      %p198 = pneg %p58
      %p199 = pneg %p55
      %p200 = pneg %p79
      %p201 = pneg %p76
      %p202 = pneg %p100
      %p203 = pneg %p97
      %p204 = pneg %p121
      %p205 = pneg %p118
      %p206 = pneg %p147
      %p207 = pneg %p144
      %p208 = scmp.lt.s32.totalorder %s16, 1
      %s209 = scalar_select %p208, %s16, 1
      %s210 = smul.addr %s209, 8
      %s211 = scalar_lea.vmem %s5, %s210
      %p212 = scmp.lt.s32.totalorder %s16, 1
      %s213 = scalar_select %p212, %s16, 1
      %s214 = smul.addr %s213, 8
      %s215 = scalar_lea.vmem %s0, %s214
      %p216 = scmp.lt.s32.totalorder %s16, 1
      %s217 = scalar_select %p216, %s16, 1
      %s218 = smul.addr %s217, 8
      %s219 = scalar_lea.vmem %s5, %s218
      %v220 = vld [vmem:[%s215] sm:$0xff]
      %v221 = vld [vmem:[%s4] sm:$0xff]
      %v222 = vpack.c.bf16 %v220, %v220
      %v223 = vld [vmem:[%s1] sm:$0xf]
      %v224 = vld [vmem:[%s1 + $0x4] sm:$0xf]
      %v225 = vld [vmem:[%s1 + $0x8] sm:$0xf]
      %v226 = vld [vmem:[%s1 + $0xc] sm:$0xf]
      %v227 = vld [vmem:[%s1 + $0x10] sm:$0xf]
      %v228 = vld [vmem:[%s1 + $0x14] sm:$0xf]
      %v229 = vld [vmem:[%s1 + $0x18] sm:$0xf]
      %v230 = vld [vmem:[%s1 + $0x1c] sm:$0xf]
      %v231 = vld [vmem:[%s1 + $0x20] sm:$0xf]
      %v232 = vld [vmem:[%s1 + $0x24] sm:$0xf]
      %v233 = vld [vmem:[%s1 + $0x28] sm:$0xf]
      %v234 = vld [vmem:[%s1 + $0x2c] sm:$0xf]
      %v235 = vld [vmem:[%s1 + $0x30] sm:$0xf]
      %v236 = vld [vmem:[%s1 + $0x34] sm:$0xf]
      %v237 = vld [vmem:[%s1 + $0x38] sm:$0xf]
      %v238 = vld [vmem:[%s1 + $0x3c] sm:$0xf]
      %v239 = vperm.slane %v221, 0
      %v256 = vunpack.c.l.b16 %v223
      %v257 = vunpack.c.l.b16 %v224
      %v258 = vunpack.c.l.b16 %v225
      %v259 = vunpack.c.l.b16 %v226
      %v260 = vunpack.c.l.b16 %v227
      %v261 = vunpack.c.l.b16 %v228
      %v262 = vunpack.c.l.b16 %v229
      %v263 = vunpack.c.l.b16 %v230
      %v264 = vunpack.c.l.b16 %v231
      %v265 = vunpack.c.l.b16 %v232
      %v266 = vunpack.c.l.b16 %v233
      %v267 = vunpack.c.l.b16 %v234
      %v268 = vunpack.c.l.b16 %v235
      %v269 = vunpack.c.l.b16 %v236
      %v270 = vunpack.c.l.b16 %v237
      %v271 = vunpack.c.l.b16 %v238
      %v272 = vpack.c.b16 %v257, %v256
      %v273 = vpack.c.b16 %v259, %v258
      %v274 = vpack.c.b16 %v261, %v260
      %v275 = vpack.c.b16 %v263, %v262
      %v276 = vpack.c.b16 %v265, %v264
      %v277 = vpack.c.b16 %v267, %v266
      %v278 = vpack.c.b16 %v269, %v268
      %v279 = vpack.c.b16 %v271, %v270
      %288 = vmatpush.bf16.msra.mxu0 %v279
      %289 = vmatpush.bf16.msra.mxu0 %v278
      %290 = vmatpush.bf16.msra.mxu0 %v277
      %291 = vmatpush.bf16.msra.mxu0 %v276
      %292 = vmatpush.bf16.msra.mxu0 %v275
      %293 = vmatpush.bf16.msra.mxu0 %v274
      %294 = vmatpush.bf16.msra.mxu0 %v273
      %295 = vmatpush.bf16.msra.mxu0 %v272
      %296 = vmatmul.bf16.gmra.mxu0 %v222
      %v297 = vpop.f32.mrf.mxu0
      %v298 = vadd.f32 %v239, %v297
      %v299 = vpop.f32.mrf.mxu0
      %300 = vdwg.mxu0
      %v301 = vmax.f32 %v298, 0.0
      %v302 = vpack.c.bf16 %v301, %v301
      %v303 = vld [vmem:[%s2] sm:$0xf]
      %v304 = vld [vmem:[%s2 + $0x4] sm:$0xf]
      %v305 = vld [vmem:[%s2 + $0x8] sm:$0xf]
      %v306 = vld [vmem:[%s2 + $0xc] sm:$0xf]
      %v307 = vld [vmem:[%s2 + $0x10] sm:$0xf]
      %v308 = vld [vmem:[%s2 + $0x14] sm:$0xf]
      %v309 = vld [vmem:[%s2 + $0x18] sm:$0xf]
      %v310 = vld [vmem:[%s2 + $0x1c] sm:$0xf]
      %v311 = vld [vmem:[%s2 + $0x20] sm:$0xf]
      %v312 = vld [vmem:[%s2 + $0x24] sm:$0xf]
      %v313 = vld [vmem:[%s2 + $0x28] sm:$0xf]
      %v314 = vld [vmem:[%s2 + $0x2c] sm:$0xf]
      %v315 = vld [vmem:[%s2 + $0x30] sm:$0xf]
      %v316 = vld [vmem:[%s2 + $0x34] sm:$0xf]
      %v317 = vld [vmem:[%s2 + $0x38] sm:$0xf]
      %v318 = vld [vmem:[%s2 + $0x3c] sm:$0xf]
      %v319 = vperm.slane %v221, 1
      %v336 = vunpack.c.l.b16 %v303
      %v337 = vunpack.c.l.b16 %v304
      %v338 = vunpack.c.l.b16 %v305
      %v339 = vunpack.c.l.b16 %v306
      %v340 = vunpack.c.l.b16 %v307
      %v341 = vunpack.c.l.b16 %v308
      %v342 = vunpack.c.l.b16 %v309
      %v343 = vunpack.c.l.b16 %v310
      %v344 = vunpack.c.l.b16 %v311
      %v345 = vunpack.c.l.b16 %v312
      %v346 = vunpack.c.l.b16 %v313
      %v347 = vunpack.c.l.b16 %v314
      %v348 = vunpack.c.l.b16 %v315
      %v349 = vunpack.c.l.b16 %v316
      %v350 = vunpack.c.l.b16 %v317
      %v351 = vunpack.c.l.b16 %v318
      %v352 = vpack.c.b16 %v337, %v336
      %v353 = vpack.c.b16 %v339, %v338
      %v354 = vpack.c.b16 %v341, %v340
      %v355 = vpack.c.b16 %v343, %v342
      %v356 = vpack.c.b16 %v345, %v344
      %v357 = vpack.c.b16 %v347, %v346
      %v358 = vpack.c.b16 %v349, %v348
      %v359 = vpack.c.b16 %v351, %v350
      %368 = vmatpush.bf16.msra.mxu0 %v359
      %369 = vmatpush.bf16.msra.mxu0 %v358
      %370 = vmatpush.bf16.msra.mxu0 %v357
      %371 = vmatpush.bf16.msra.mxu0 %v356
      %372 = vmatpush.bf16.msra.mxu0 %v355
      %373 = vmatpush.bf16.msra.mxu0 %v354
      %374 = vmatpush.bf16.msra.mxu0 %v353
      %375 = vmatpush.bf16.msra.mxu0 %v352
      %376 = vmatmul.bf16.gmra.mxu0 %v302
      %v377 = vpop.f32.mrf.mxu0
      %v378 = vadd.f32 %v319, %v377
      %v379 = vpop.f32.mrf.mxu0
      %380 = vdwg.mxu0
      %v381 = vmax.f32 %v378, 0.0
      %v382 = vpack.c.bf16 %v381, %v381
      %v383 = vld [vmem:[%s3] sm:$0xf]
      %v384 = vld [vmem:[%s3 + $0x4] sm:$0xf]
      %v385 = vld [vmem:[%s3 + $0x8] sm:$0xf]
      %v386 = vld [vmem:[%s3 + $0xc] sm:$0xf]
      %v387 = vld [vmem:[%s3 + $0x10] sm:$0xf]
      %v388 = vld [vmem:[%s3 + $0x14] sm:$0xf]
      %v389 = vld [vmem:[%s3 + $0x18] sm:$0xf]
      %v390 = vld [vmem:[%s3 + $0x1c] sm:$0xf]
      %v391 = vld [vmem:[%s3 + $0x20] sm:$0xf]
      %v392 = vld [vmem:[%s3 + $0x24] sm:$0xf]
      %v393 = vld [vmem:[%s3 + $0x28] sm:$0xf]
      %v394 = vld [vmem:[%s3 + $0x2c] sm:$0xf]
      %v395 = vld [vmem:[%s3 + $0x30] sm:$0xf]
      %v396 = vld [vmem:[%s3 + $0x34] sm:$0xf]
      %v397 = vld [vmem:[%s3 + $0x38] sm:$0xf]
      %v398 = vld [vmem:[%s3 + $0x3c] sm:$0xf]
      %v399 = vperm.slane %v221, 2
      %v416 = vunpack.c.l.b16 %v383
      %v417 = vunpack.c.l.b16 %v384
      %v418 = vunpack.c.l.b16 %v385
      %v419 = vunpack.c.l.b16 %v386
      %v420 = vunpack.c.l.b16 %v387
      %v421 = vunpack.c.l.b16 %v388
      %v422 = vunpack.c.l.b16 %v389
      %v423 = vunpack.c.l.b16 %v390
      %v424 = vunpack.c.l.b16 %v391
      %v425 = vunpack.c.l.b16 %v392
      %v426 = vunpack.c.l.b16 %v393
      %v427 = vunpack.c.l.b16 %v394
      %v428 = vunpack.c.l.b16 %v395
      %v429 = vunpack.c.l.b16 %v396
      %v430 = vunpack.c.l.b16 %v397
      %v431 = vunpack.c.l.b16 %v398
      %v432 = vpack.c.b16 %v417, %v416
      %v433 = vpack.c.b16 %v419, %v418
      %v434 = vpack.c.b16 %v421, %v420
      %v435 = vpack.c.b16 %v423, %v422
      %v436 = vpack.c.b16 %v425, %v424
      %v437 = vpack.c.b16 %v427, %v426
      %v438 = vpack.c.b16 %v429, %v428
      %v439 = vpack.c.b16 %v431, %v430
      %448 = vmatpush.bf16.msra.mxu0 %v439
      %449 = vmatpush.bf16.msra.mxu0 %v438
      %450 = vmatpush.bf16.msra.mxu0 %v437
      %451 = vmatpush.bf16.msra.mxu0 %v436
      %452 = vmatpush.bf16.msra.mxu0 %v435
      %453 = vmatpush.bf16.msra.mxu0 %v434
      %454 = vmatpush.bf16.msra.mxu0 %v433
      %455 = vmatpush.bf16.msra.mxu0 %v432
      %456 = vmatmul.bf16.gmra.mxu0 %v382
      %v457 = vpop.f32.mrf.mxu0
      %v458 = vadd.f32 %v399, %v457
      %v459 = vpop.f32.mrf.mxu0
      %460 = vdwg.mxu0
      %v461 = vadd.f32 %v220, %v458
      %462 = vadd.xlane.f32.xlu0 %v461
      %v463 = vpop.xlane.xlu0 %462
      %v464 = vmul.f32 %v463, 0.03125
      %v465 = vsub.f32 %v461, %v464
      %v466 = vlaneseq
      %v467 = vand.u32 %v466, 127
      %vm468 = vcmp.lt.s32.totalorder %v467, 32
      %v469 = vsel %vm468, 1, 0
      %vm470 = vcmp.eq.s32.totalorder %v469, 1
      %v471 = vsel %vm470, %v465, 0.0
      %v472 = vmul.f32 %v471, %v471
      %473 = vadd.xlane.f32.xlu0 %v472
      %v474 = vpop.xlane.xlu0 %473
      %v475 = vmul.f32 %v474, 0.03125
      %v476 = vadd.f32 %v475, 1e-05
      %v477 = vrsqrt.pop %v476
      %v478 = vmul.f32 %v477, %v476
      %v479 = vmul.f32 %v478, %v477
      %v480 = vmul.f32 0.5, %v479
      %v481 = vsub.f32 1.5, %v480
      %v482 = vmul.f32 %v477, %v481
      %vm483 = vweird.f32 %v476
      %vm484 = vweird.f32 %v477
      %vm485 = vmor %vm483, %vm484
      %v486 = vsel %vm485, %v477, %v482
      %v487 = vmul.f32 %v471, %v486
      %v488 = vperm.slane %v221, 3
      %v489 = vmul.f32 %v487, %v488
      %v490 = vperm.slane %v221, 4
      %v491 = vadd.f32 %v489, %v490
      %492 = vst [vmem:[%s219] sm:$0xff] %v491
      %p493 = scmp.lt.s32.totalorder %s16, 1
      %s494 = scalar_select %p493, %s16, 1
      %s495 = smul.addr %s494, 8
      %s496 = scalar_lea.vmem %s5, %s495
      // Predicated region
      $region41: #{structure_module_transition.1} parent=39 // pred_check
        %p497 = pneg %p144
      $region42: #{structure_module_transition.1} parent=39 // pred_check_branch
        %499 = sbr.rel (%p497) target = $region44
      $region43: #{structure_module_transition.1} parent=39 // pred_region
        _
      $region44: #{structure_module_transition.1} parent=39 // pred_fallthru
        _
    $region40: #{structure_module_transition.1} parent=5 // pred_fallthru
      _
    %p500 = scmp.le.s32.totalorder 2, %s11
    // Predicated region
    $region45: #{structure_module_transition.1} parent=5 // pred_check
      %p501 = pneg %p500
    $region46: #{structure_module_transition.1} parent=5 // pred_check_branch
      %503 = sbr.rel (%p501) target = $region48
    $region47: #{structure_module_transition.1} parent=5 // pred_region
      %s504 = ssub.s32 %s11, 2
      // Predicated region
      $region49: #{structure_module_transition.1} parent=47 // pred_check
        %p505 = pneg %p150
      $region50: #{structure_module_transition.1} parent=47 // pred_check_branch
        %507 = sbr.rel (%p505) target = $region52
      $region51: #{structure_module_transition.1} parent=47 // pred_region
        %p508 = scmp.lt.s32.totalorder %s17, 1
        %s509 = scalar_select %p508, %s17, 1
        %s510 = smul.addr %s509, 8
        %s511 = scalar_lea.vmem %s5, %s510
      $region52: #{structure_module_transition.1} parent=47 // pred_fallthru
        _
    $region48: #{structure_module_transition.1} parent=5 // pred_fallthru
      _
  $region6: #{structure_module_transition.1} parent=0 // loop_footer
    %s15 = sadd.s32 1, %s11
  $region7: #{structure_module_transition.1} parent=0 // loop_footer_branch
    %10 = sbr.rel target = $region3
  $region8: #{structure_module_transition.1} parent=0 // loop_exit
    _

</llo_original>
